<compile_context>
chip_gen: v7x
topology: tpu7x:2x2x1
jax: 0.10.0
libtpu: 0.0.40
codegen_flags: <defaults>
</compile_context>

<pallas_src>
import functools
import math

import jax
import jax.numpy as jnp
from jax import lax
from jax.experimental import pallas as pl
from jax.experimental.pallas import tpu as pltpu


def _cffn_kernel(x_ref, w1_ref, b1_ref, w2_ref, b2_ref, w3_ref, b3_ref, o_ref,
                 *, chunk, ew_dtype):
    # Weights were pre-cast to the MXU dtype in the wrapper: no per-step cast.
    w1 = w1_ref[...]
    w2 = w2_ref[...]
    w3 = w3_ref[...]
    mm_dtype = w1.dtype
    b1 = b1_ref[...].astype(ew_dtype)
    b2 = b2_ref[...].astype(ew_dtype)
    b3 = b3_ref[...].astype(ew_dtype)

    pix = x_ref.shape[-1]
    n_chunks = pix // chunk  # static

    # Chunk over the lane axis so each layer's (hdim, chunk) intermediate stays
    # in vregs instead of spilling (hdim, pix) f32 arrays through VMEM.
    def body(c, carry):
        start = pl.multiple_of(c * chunk, 128)
        x = x_ref[:, pl.ds(start, chunk)].astype(mm_dtype)

        # layer 0: Conv2d(in_c, h, 1) + ReLU
        h1 = jnp.dot(w1, x, preferred_element_type=jnp.float32)
        h1 = jnp.maximum(h1.astype(ew_dtype) + b1, 0.0)

        # layer 1 (hidden): Conv2d(h, h, 1) + ReLU
        h2 = jnp.dot(w2, h1.astype(mm_dtype), preferred_element_type=jnp.float32)
        h2 = jnp.maximum(h2.astype(ew_dtype) + b2, 0.0)

        # output layer: Conv2d(h, out_c, 1), no activation
        out = jnp.dot(w3, h2.astype(mm_dtype), preferred_element_type=jnp.float32)
        out = out.astype(ew_dtype) + b3

        o_ref[:, pl.ds(start, chunk)] = out.astype(o_ref.dtype)
        return carry

    lax.fori_loop(0, n_chunks, body, None, unroll=True)


def _round_up(v, m):
    return -(-v // m) * m


def _pick_pix_tile(hw_pad, cap, prefer_even_tiles):
    """Largest multiple-of-128 divisor of hw_pad that is <= cap.

    If prefer_even_tiles (odd batch), prefer a candidate giving an even number
    of pixel tiles so a 2-TensorCore (v7x) megacore split stays balanced.
    """
    cap = max(128, min(cap, hw_pad))
    best, best_even = 128, None
    d = 128
    while d <= cap:
        if hw_pad % d == 0:
            best = d
            if (hw_pad // d) % 2 == 0:
                best_even = d
        d += 128
    if prefer_even_tiles and best_even is not None:
        return best_even
    return best


def _pick_chunk(pix, target):
    """Largest multiple of 128 <= min(target, pix) that divides pix."""
    c = max(128, min(target, pix))
    c = (c // 128) * 128
    while pix % c:
        c -= 128
    return c


def _default_elementwise_dtype():
    # v6e/v7x VALUs are bf16-capable (packed bf16 halves elementwise footprint);
    # v5e has no bf16 VPU, keep f32 there (also the safe fallback).
    try:
        kind = jax.devices()[0].device_kind.lower()
    except Exception:
        return jnp.float32
    if ("v6" in kind) or ("v7" in kind):
        return jnp.bfloat16
    return jnp.float32


def prepare_params(params, matmul_dtype=jnp.bfloat16):
    """One-time parameter prep: weights to the MXU dtype, biases stay f32."""
    w1, b1, w2, b2, w3, b3 = params
    return (w1.astype(matmul_dtype), b1.astype(jnp.float32),
            w2.astype(matmul_dtype), b2.astype(jnp.float32),
            w3.astype(matmul_dtype), b3.astype(jnp.float32))


def cffn_forward(x_nchw, params, *,
                 vmem_budget_bytes=24 << 20,   # tile budget; fits all generations
                 chunk_target=512,
                 matmul_dtype=jnp.bfloat16,
                 elementwise_dtype=None):
    """x_nchw: (N, C_in, H, W).  Returns (N, C_out, H, W).

    Weights use the torch Conv2d 1x1 layout: w = (out_c, in_c), b = (out_c, 1).
    """
    w1, b1, w2, b2, w3, b3 = params
    N, C_in, H, W = x_nchw.shape
    hdim = w1.shape[0]
    C_out = w3.shape[0]
    HW = H * W
    HW_pad = _round_up(HW, 128)

    if elementwise_dtype is None:
        elementwise_dtype = _default_elementwise_dtype()

    # No-op if params already went through prepare_params().
    w1, w2, w3 = (w.astype(matmul_dtype) for w in (w1, w2, w3))
    b1, b2, b3 = (b.astype(jnp.float32) for b in (b1, b2, b3))

    # NCHW -> (N, C_in, H*W): free reshape (no transpose); channels stay on the
    # sublane axis, pixels land on the lane (fast) axis.  Pad the pixel axis to
    # a lane multiple so output stores stay unmasked and lane-dense.
    x = x_nchw.reshape(N, C_in, HW)
    if HW_pad != HW:
        x = jnp.pad(x, ((0, 0), (0, 0), (0, HW_pad - HW)))

    itemsize = jnp.dtype(x.dtype).itemsize
    weight_bytes = sum(int(a.size) * jnp.dtype(a.dtype).itemsize
                       for a in (w1, b1, w2, b2, w3, b3))
    # Explicit VMEM budget: double-buffered x/out tiles + (double-buffer-counted)
    # resident weights + chunk-sized compiler intermediates + headroom.
    io_bytes_per_pix = 2 * (C_in + C_out) * itemsize
    chunk_scratch = 4 * hdim * chunk_target * 4
    avail = vmem_budget_bytes - 2 * weight_bytes - chunk_scratch - (2 << 20)
    max_pix = max(128, (avail // io_bytes_per_pix) // 128 * 128)

    pix = _pick_pix_tile(HW_pad, max_pix, prefer_even_tiles=(N % 2 == 1))
    chunk = _pick_chunk(pix, chunk_target)
    grid = (N, HW_pad // pix)

    flops = 2 * N * HW_pad * (C_in * hdim + hdim * hdim + hdim * C_out)
    bytes_accessed = N * HW_pad * (C_in + C_out) * itemsize + weight_bytes

    kernel = functools.partial(_cffn_kernel, chunk=chunk,
                               ew_dtype=elementwise_dtype)

    out = pl.pallas_call(
        kernel,
        out_shape=jax.ShapeDtypeStruct((N, C_out, HW_pad), x.dtype),
        grid_spec=pltpu.PrefetchScalarGridSpec(
            num_scalar_prefetch=0,
            grid=grid,
            in_specs=[
                pl.BlockSpec((pl.Squeezed(), C_in, pix),
                             lambda n, p: (n, 0, p)),                 # x tile
                pl.BlockSpec((hdim, C_in), lambda n, p: (0, 0)),      # w1
                pl.BlockSpec((hdim, 1), lambda n, p: (0, 0)),         # b1
                pl.BlockSpec((hdim, hdim), lambda n, p: (0, 0)),      # w2
                pl.BlockSpec((hdim, 1), lambda n, p: (0, 0)),         # b2
                pl.BlockSpec((C_out, hdim), lambda n, p: (0, 0)),     # w3
                pl.BlockSpec((C_out, 1), lambda n, p: (0, 0)),        # b3
            ],
            out_specs=pl.BlockSpec((pl.Squeezed(), C_out, pix),
                                   lambda n, p: (n, 0, p)),
        ),
        compiler_params=pltpu.CompilerParams(
            dimension_semantics=("parallel", "parallel"),
            vmem_limit_bytes=32 << 20),
        cost_estimate=pl.CostEstimate(
            flops=flops, transcendentals=0, bytes_accessed=bytes_accessed),
    )(x, w1, b1, w2, b2, w3, b3)

    if HW_pad != HW:
        out = out[:, :, :HW]
    # (N, C_out, H*W) -> (N, C_out, H, W): free reshape.
    return out.reshape(N, C_out, H, W)


def init_params(key, in_c, h, out_c):
    """Deterministic synthetic params in torch Conv2d 1x1 layout: w=(out,in), b=(out,1)."""
    ks = jax.random.split(key, 6)

    def uinit(k, fan_in, shape):
        bound = 1.0 / math.sqrt(fan_in)
        return jax.random.uniform(k, shape, jnp.float32, -bound, bound)

    w1 = uinit(ks[0], in_c, (h, in_c))
    b1 = uinit(ks[1], in_c, (h, 1))
    w2 = uinit(ks[2], h, (h, h))
    b2 = uinit(ks[3], h, (h, 1))
    w3 = uinit(ks[4], h, (out_c, h))
    b3 = uinit(ks[5], h, (out_c, 1))
    return (w1, b1, w2, b2, w3, b3)


def cffn_reference(x_nchw, params):
    """Pure-JAX f32 reference."""
    w1, b1, w2, b2, w3, b3 = params
    N, C_in, H, W = x_nchw.shape
    x = x_nchw.reshape(N, C_in, H * W).astype(jnp.float32)
    h1 = jnp.maximum(jnp.einsum('oc,ncp->nop', w1, x) + b1[None], 0.0)
    h2 = jnp.maximum(jnp.einsum('oc,ncp->nop', w2, h1) + b2[None], 0.0)
    o = jnp.einsum('oc,ncp->nop', w3, h2) + b3[None]
    return o.reshape(N, -1, H, W)


if __name__ == "__main__":
    # Small shapes consistent with CFFN(in_c=4, h=32, out_c=4)
    N, C_in, H, W = 2, 4, 16, 16
    hdim, C_out = 32, 4

    key = jax.random.PRNGKey(0)
    kx, kp = jax.random.split(key)
    x = jax.random.normal(kx, (N, C_in, H, W), jnp.float32)
    params_f32 = init_params(kp, C_in, hdim, C_out)
    params = prepare_params(params_f32)   # one-time bf16 weight cast

    out = jax.block_until_ready(cffn_forward(x, params))
    ref = cffn_reference(x, params_f32)

    assert out.shape == (N, C_out, H, W)
    # bf16 MXU operands (f32 accumulate, bf16/f32 elementwise) vs f32 reference.
    assert jnp.allclose(out, ref, atol=3e-2, rtol=3e-2), (
        float(jnp.max(jnp.abs(out - ref))))

    print("KERNEL_OK")
</pallas_src>

<mosaic_0001>
module attributes {stable_mosaic.version = 11 : i64} {
  func.func @_cffn_kernel(%arg0: i32, %arg1: i32, %arg2: memref<1x4x256xf32, #tpu.memory_space<vmem>>, %arg3: memref<32x4xbf16, #tpu.memory_space<vmem>>, %arg4: memref<32x1xf32, #tpu.memory_space<vmem>>, %arg5: memref<32x32xbf16, #tpu.memory_space<vmem>>, %arg6: memref<32x1xf32, #tpu.memory_space<vmem>>, %arg7: memref<4x32xbf16, #tpu.memory_space<vmem>>, %arg8: memref<4x1xf32, #tpu.memory_space<vmem>>, %arg9: memref<1x4x256xf32, #tpu.memory_space<vmem>>) attributes {dimension_semantics = [#tpu.dimension_semantics<parallel>, #tpu.dimension_semantics<parallel>], iteration_bounds = array<i64: 2, 1>, scalar_prefetch = 0 : i64, scratch_operands = 0 : i64, tpu.core_type = #tpu.core_type<tc>, window_params = [{transform_indices = @transform_0, window_bounds = array<i64: 1, 4, 256>}, {pipeline_mode = #tpu.pipeline_mode<synchronous>, transform_indices = @transform_1, window_bounds = array<i64: 32, 4>}, {pipeline_mode = #tpu.pipeline_mode<synchronous>, transform_indices = @transform_2, window_bounds = array<i64: 32, 1>}, {pipeline_mode = #tpu.pipeline_mode<synchronous>, transform_indices = @transform_3, window_bounds = array<i64: 32, 32>}, {pipeline_mode = #tpu.pipeline_mode<synchronous>, transform_indices = @transform_4, window_bounds = array<i64: 32, 1>}, {pipeline_mode = #tpu.pipeline_mode<synchronous>, transform_indices = @transform_5, window_bounds = array<i64: 4, 32>}, {pipeline_mode = #tpu.pipeline_mode<synchronous>, transform_indices = @transform_6, window_bounds = array<i64: 4, 1>}, {transform_indices = @transform_7, window_bounds = array<i64: 1, 4, 256>}]} {
    %c0 = arith.constant 0 : index
    %c0_0 = arith.constant 0 : index
    %0 = vector.load %arg3[%c0, %c0_0] : memref<32x4xbf16, #tpu.memory_space<vmem>>, vector<32x4xbf16>
    %c0_1 = arith.constant 0 : index
    %c0_2 = arith.constant 0 : index
    %1 = vector.load %arg5[%c0_1, %c0_2] : memref<32x32xbf16, #tpu.memory_space<vmem>>, vector<32x32xbf16>
    %c0_3 = arith.constant 0 : index
    %c0_4 = arith.constant 0 : index
    %2 = vector.load %arg7[%c0_3, %c0_4] : memref<4x32xbf16, #tpu.memory_space<vmem>>, vector<4x32xbf16>
    %c0_5 = arith.constant 0 : index
    %c0_6 = arith.constant 0 : index
    %3 = vector.load %arg4[%c0_5, %c0_6] : memref<32x1xf32, #tpu.memory_space<vmem>>, vector<32x1xf32>
    %c0_7 = arith.constant 0 : index
    %c0_8 = arith.constant 0 : index
    %4 = vector.load %arg6[%c0_7, %c0_8] : memref<32x1xf32, #tpu.memory_space<vmem>>, vector<32x1xf32>
    %c0_9 = arith.constant 0 : index
    %c0_10 = arith.constant 0 : index
    %5 = vector.load %arg8[%c0_9, %c0_10] : memref<4x1xf32, #tpu.memory_space<vmem>>, vector<4x1xf32>
    %c0_i32 = arith.constant 0 : i32
    %c256_i32 = arith.constant 256 : i32
    %6 = arith.muli %c0_i32, %c256_i32 : i32
    %7 = tpu.assume_multiple %6, 128 : i32
    %c0_11 = arith.constant 0 : index
    %c0_12 = arith.constant 0 : index
    %8 = arith.index_cast %7 : i32 to index
    %9 = vector.load %arg2[%c0_11, %c0_12, %8] : memref<1x4x256xf32, #tpu.memory_space<vmem>>, vector<1x4x256xf32>
    %10 = vector.shape_cast %9 : vector<1x4x256xf32> to vector<4x256xf32>
    %11 = arith.truncf %10 : vector<4x256xf32> to vector<4x256xbf16>
    %cst = arith.constant dense<0.000000e+00> : vector<32x256xf32>
    %12 = tpu.matmul %0, %11, %cst {dimension_numbers = #tpu.dot_dimension_numbers<[1], [0], [0], [1], [0, 0, 1, 1], [], []>} : vector<32x4xbf16>, vector<4x256xbf16>, vector<32x256xf32> -> vector<32x256xf32>
    %13 = vector.broadcast %3 : vector<32x1xf32> to vector<32x256xf32>
    %14 = arith.addf %12, %13 : vector<32x256xf32>
    %cst_13 = arith.constant 0.000000e+00 : f32
    %15 = vector.broadcast %cst_13 : f32 to vector<32x256xf32>
    %16 = arith.maximumf %14, %15 : vector<32x256xf32>
    %17 = arith.truncf %16 : vector<32x256xf32> to vector<32x256xbf16>
    %cst_14 = arith.constant dense<0.000000e+00> : vector<32x256xf32>
    %18 = tpu.matmul %1, %17, %cst_14 {dimension_numbers = #tpu.dot_dimension_numbers<[1], [0], [0], [1], [0, 0, 1, 1], [], []>} : vector<32x32xbf16>, vector<32x256xbf16>, vector<32x256xf32> -> vector<32x256xf32>
    %19 = vector.broadcast %4 : vector<32x1xf32> to vector<32x256xf32>
    %20 = arith.addf %18, %19 : vector<32x256xf32>
    %cst_15 = arith.constant 0.000000e+00 : f32
    %21 = vector.broadcast %cst_15 : f32 to vector<32x256xf32>
    %22 = arith.maximumf %20, %21 : vector<32x256xf32>
    %23 = arith.truncf %22 : vector<32x256xf32> to vector<32x256xbf16>
    %cst_16 = arith.constant dense<0.000000e+00> : vector<4x256xf32>
    %24 = tpu.matmul %2, %23, %cst_16 {dimension_numbers = #tpu.dot_dimension_numbers<[1], [0], [0], [1], [0, 0, 1, 1], [], []>} : vector<4x32xbf16>, vector<32x256xbf16>, vector<4x256xf32> -> vector<4x256xf32>
    %25 = vector.broadcast %5 : vector<4x1xf32> to vector<4x256xf32>
    %26 = arith.addf %24, %25 : vector<4x256xf32>
    %c0_17 = arith.constant 0 : index
    %c0_18 = arith.constant 0 : index
    %27 = arith.index_cast %7 : i32 to index
    %28 = vector.load %arg9[%c0_17, %c0_18, %27] : memref<1x4x256xf32, #tpu.memory_space<vmem>>, vector<1x4x256xf32>
    %29 = vector.shape_cast %28 : vector<1x4x256xf32> to vector<4x256xf32>
    %30 = vector.shape_cast %26 : vector<4x256xf32> to vector<1x4x256xf32>
    tpu.vector_store %arg9[%c0_17, %c0_18, %27], %30 {strides = array<i32>} : memref<1x4x256xf32, #tpu.memory_space<vmem>>, vector<1x4x256xf32>,
    %c1_i32 = arith.constant 1 : i32
    return
  }
  func.func @transform_0(%arg0: i32, %arg1: i32) -> (i32, i32, i32) {
    %c0_i32 = arith.constant 0 : i32
    %c0_i32_0 = arith.constant 0 : i32
    return %arg0, %c0_i32, %arg1 : i32, i32, i32
  }
  func.func @transform_1(%arg0: i32, %arg1: i32) -> (i32, i32) {
    %c0_i32 = arith.constant 0 : i32
    %c0_i32_0 = arith.constant 0 : i32
    %c0_i32_1 = arith.constant 0 : i32
    return %c0_i32, %c0_i32_0 : i32, i32
  }
  func.func @transform_2(%arg0: i32, %arg1: i32) -> (i32, i32) {
    %c0_i32 = arith.constant 0 : i32
    %c0_i32_0 = arith.constant 0 : i32
    %c0_i32_1 = arith.constant 0 : i32
    return %c0_i32, %c0_i32_0 : i32, i32
  }
  func.func @transform_3(%arg0: i32, %arg1: i32) -> (i32, i32) {
    %c0_i32 = arith.constant 0 : i32
    %c0_i32_0 = arith.constant 0 : i32
    %c0_i32_1 = arith.constant 0 : i32
    return %c0_i32, %c0_i32_0 : i32, i32
  }
  func.func @transform_4(%arg0: i32, %arg1: i32) -> (i32, i32) {
    %c0_i32 = arith.constant 0 : i32
    %c0_i32_0 = arith.constant 0 : i32
    %c0_i32_1 = arith.constant 0 : i32
    return %c0_i32, %c0_i32_0 : i32, i32
  }
  func.func @transform_5(%arg0: i32, %arg1: i32) -> (i32, i32) {
    %c0_i32 = arith.constant 0 : i32
    %c0_i32_0 = arith.constant 0 : i32
    %c0_i32_1 = arith.constant 0 : i32
    return %c0_i32, %c0_i32_0 : i32, i32
  }
  func.func @transform_6(%arg0: i32, %arg1: i32) -> (i32, i32) {
    %c0_i32 = arith.constant 0 : i32
    %c0_i32_0 = arith.constant 0 : i32
    %c0_i32_1 = arith.constant 0 : i32
    return %c0_i32, %c0_i32_0 : i32, i32
  }
  func.func @transform_7(%arg0: i32, %arg1: i32) -> (i32, i32, i32) {
    %c0_i32 = arith.constant 0 : i32
    %c0_i32_0 = arith.constant 0 : i32
    return %arg0, %c0_i32, %arg1 : i32, i32, i32
  }
}

</mosaic_0001>

<llo_original>
// kernel: tpu_custom_call.1
$region0: #{tpu_custom_call.1}
  #allocation0 [shape = 'u32[]', space=smem, size = 0x4, offset = 0x4, fixed_abs, tag = 'smem constant byte address 0x4 - core index']
  #allocation1 [shape = 'u32[144,128]{1,0:T(1,128)}', space=vmem, size = 0x12000, scoped, tag = 'internal scratch']
  %s0 = inlined_call_operand.vmem [shape: f32[2,4,256], index: 0, kind: input, shape index: {}]
  %s1 = inlined_call_operand.vmem [shape: bf16[32,4], index: 1, kind: input, shape index: {}]
  %s2 = inlined_call_operand.vmem [shape: f32[32,1], index: 2, kind: input, shape index: {}]
  %s3 = inlined_call_operand.vmem [shape: bf16[32,32], index: 3, kind: input, shape index: {}]
  %s4 = inlined_call_operand.vmem [shape: f32[32,1], index: 4, kind: input, shape index: {}]
  %s5 = inlined_call_operand.vmem [shape: bf16[4,32], index: 5, kind: input, shape index: {}]
  %s6 = inlined_call_operand.vmem [shape: f32[4,1], index: 6, kind: input, shape index: {}]
  %s7 = inlined_call_operand.hbm [shape: f32[2,4,256], index: 7, kind: output, shape index: {}]
  %s8 = sld [smem:[#allocation0]]
  $region61: #{tpu_custom_call.1} parent=0
    _
  %s10 = ssub.s32 1, %s8
  %s11 = scalar_select 0, %s10, %s8
  $region1: #{tpu_custom_call.1} parent=0
    #allocation2 [shape = 'u8[8192]{0}', space=vmem, size = 0x2000, scoped, tag = 'output window, operand 0']
    #allocation3 [shape = 's32[2]{0}', space=sflag, size = 0x8, scoped, tag = 'scoped memory for tpu_custom_call.1']
    %12 = vsyncpa [#allocation3], 0
    %s13 = scalar_lea.sflag [#allocation3], 1
    %14 = vsyncpa %s13, 0
    loop: start=0, step=1, limit=4
    $region2: #{tpu_custom_call.1} parent=1 // loop_pre_header
      _
    $region3: #{tpu_custom_call.1} parent=1 // loop_header
      %s16 = sphi 0, %s20
      %p17 = scmp.ge.s32.totalorder %s16, 4
      %s23 = sphi 0, %s35
      %s24 = sphi 0, %s31
      %s25 = sphi 0, %s23
      %s26 = sphi 0, %s24
      %s27 = sphi 0, %s25
      %s28 = sphi 0, %s26
      %s40 = sphi 0, %s42
      %s43 = sphi 0, %s40
      %s44 = sphi 0, %s43
      %s60 = sphi 0, %s44
      %s64 = sphi 0, %s64
      %s66 = sphi 0, %s64
      %s67 = sphi 0, %s66
      %s81 = sphi 0, %s67
      %s85 = sphi 0, %s85
      %s87 = sphi 0, %s85
      %s88 = sphi 0, %s87
      %s102 = sphi 0, %s88
      %s106 = sphi 0, %s106
      %s108 = sphi 0, %s106
      %s109 = sphi 0, %s108
      %s123 = sphi 0, %s109
      %s127 = sphi 0, %s127
      %s129 = sphi 0, %s127
      %s130 = sphi 0, %s129
      %s144 = sphi 0, %s130
      %s148 = sphi 0, %s148
      %s150 = sphi 0, %s148
      %s151 = sphi 0, %s150
      %s165 = sphi 0, %s151
      %s169 = sphi 0, %s169
      %s171 = sphi 0, %s169
      %s172 = sphi 0, %s171
      %s186 = sphi 0, %s172
      %s194 = sphi 0, %s196
      %s197 = sphi 0, %s194
      %s198 = sphi 0, %s197
      %s214 = sphi 0, %s198
    $region4: #{tpu_custom_call.1} parent=1 // loop_header_branch
      %19 = sbr.rel (%p17) target = $region8
    $region5: #{tpu_custom_call.1} parent=1 // loop_body
      %s21 = ssub.s32 %s16, 1
      %s22 = ssub.s32 %s16, 2
      %s29 = sadd.s32 1, %s24
      %p30 = scmp.ge.s32.totalorder %s29, 1
      %s31 = scalar_select %p30, 0, %s29
      %s32 = sadd.s32 1, %s23
      %s33 = scalar_select %p30, %s32, %s23
      %p34 = scmp.ge.s32.totalorder %s33, 2
      %s35 = scalar_select %p34, 0, %s33
      %s36 = ssub.s32 %s23, %s35
      %s37 = ssub.s32 %s24, %s31
      %s38 = sor.u32 %s36, %s37
      %p39 = scmp.eq.s32.totalorder %s38, 0
      %s41 = sadd.s32 %s40, 1
      %s42 = scalar_select %p39, %s40, %s41
      %p45 = pneg %p39
      %p46 = scmp.eq.s32.totalorder %s16, 1
      %p47 = por %p45, %p46
      %p48 = scmp.ne.s32.totalorder %s40, %s43
      %p49 = scmp.eq.s32.totalorder %s16, 0
      %p50 = por %p48, %p49
      %p51 = scmp.ne.s32.totalorder %s40, %s43
      %p52 = scmp.eq.s32.totalorder %s21, 1
      %p53 = por %p51, %p52
      %p54 = scmp.ne.s32.totalorder %s43, %s44
      %p55 = scmp.eq.s32.totalorder %s21, 0
      %p56 = por %p54, %p55
      %p57 = scmp.ne.s32.totalorder %s43, %s44
      %p58 = scmp.eq.s32.totalorder %s22, 1
      %p59 = por %p57, %p58
      %p61 = scmp.ne.s32.totalorder %s44, %s60
      %p62 = scmp.eq.s32.totalorder %s22, 0
      %p63 = por %p61, %p62
      %s65 = sadd.s32 %s64, 1
      %p68 = scmp.eq.s32.totalorder %s16, 1
      %p69 = scmp.ne.s32.totalorder %s64, %s66
      %p70 = scmp.eq.s32.totalorder %s16, 0
      %p71 = por %p69, %p70
      %p72 = scmp.ne.s32.totalorder %s64, %s66
      %p73 = scmp.eq.s32.totalorder %s21, 1
      %p74 = por %p72, %p73
      %p75 = scmp.ne.s32.totalorder %s66, %s67
      %p76 = scmp.eq.s32.totalorder %s21, 0
      %p77 = por %p75, %p76
      %p78 = scmp.ne.s32.totalorder %s66, %s67
      %p79 = scmp.eq.s32.totalorder %s22, 1
      %p80 = por %p78, %p79
      %p82 = scmp.ne.s32.totalorder %s67, %s81
      %p83 = scmp.eq.s32.totalorder %s22, 0
      %p84 = por %p82, %p83
      %s86 = sadd.s32 %s85, 1
      %p89 = scmp.eq.s32.totalorder %s16, 1
      %p90 = scmp.ne.s32.totalorder %s85, %s87
      %p91 = scmp.eq.s32.totalorder %s16, 0
      %p92 = por %p90, %p91
      %p93 = scmp.ne.s32.totalorder %s85, %s87
      %p94 = scmp.eq.s32.totalorder %s21, 1
      %p95 = por %p93, %p94
      %p96 = scmp.ne.s32.totalorder %s87, %s88
      %p97 = scmp.eq.s32.totalorder %s21, 0
      %p98 = por %p96, %p97
      %p99 = scmp.ne.s32.totalorder %s87, %s88
      %p100 = scmp.eq.s32.totalorder %s22, 1
      %p101 = por %p99, %p100
      %p103 = scmp.ne.s32.totalorder %s88, %s102
      %p104 = scmp.eq.s32.totalorder %s22, 0
      %p105 = por %p103, %p104
      %s107 = sadd.s32 %s106, 1
      %p110 = scmp.eq.s32.totalorder %s16, 1
      %p111 = scmp.ne.s32.totalorder %s106, %s108
      %p112 = scmp.eq.s32.totalorder %s16, 0
      %p113 = por %p111, %p112
      %p114 = scmp.ne.s32.totalorder %s106, %s108
      %p115 = scmp.eq.s32.totalorder %s21, 1
      %p116 = por %p114, %p115
      %p117 = scmp.ne.s32.totalorder %s108, %s109
      %p118 = scmp.eq.s32.totalorder %s21, 0
      %p119 = por %p117, %p118
      %p120 = scmp.ne.s32.totalorder %s108, %s109
      %p121 = scmp.eq.s32.totalorder %s22, 1
      %p122 = por %p120, %p121
      %p124 = scmp.ne.s32.totalorder %s109, %s123
      %p125 = scmp.eq.s32.totalorder %s22, 0
      %p126 = por %p124, %p125
      %s128 = sadd.s32 %s127, 1
      %p131 = scmp.eq.s32.totalorder %s16, 1
      %p132 = scmp.ne.s32.totalorder %s127, %s129
      %p133 = scmp.eq.s32.totalorder %s16, 0
      %p134 = por %p132, %p133
      %p135 = scmp.ne.s32.totalorder %s127, %s129
      %p136 = scmp.eq.s32.totalorder %s21, 1
      %p137 = por %p135, %p136
      %p138 = scmp.ne.s32.totalorder %s129, %s130
      %p139 = scmp.eq.s32.totalorder %s21, 0
      %p140 = por %p138, %p139
      %p141 = scmp.ne.s32.totalorder %s129, %s130
      %p142 = scmp.eq.s32.totalorder %s22, 1
      %p143 = por %p141, %p142
      %p145 = scmp.ne.s32.totalorder %s130, %s144
      %p146 = scmp.eq.s32.totalorder %s22, 0
      %p147 = por %p145, %p146
      %s149 = sadd.s32 %s148, 1
      %p152 = scmp.eq.s32.totalorder %s16, 1
      %p153 = scmp.ne.s32.totalorder %s148, %s150
      %p154 = scmp.eq.s32.totalorder %s16, 0
      %p155 = por %p153, %p154
      %p156 = scmp.ne.s32.totalorder %s148, %s150
      %p157 = scmp.eq.s32.totalorder %s21, 1
      %p158 = por %p156, %p157
      %p159 = scmp.ne.s32.totalorder %s150, %s151
      %p160 = scmp.eq.s32.totalorder %s21, 0
      %p161 = por %p159, %p160
      %p162 = scmp.ne.s32.totalorder %s150, %s151
      %p163 = scmp.eq.s32.totalorder %s22, 1
      %p164 = por %p162, %p163
      %p166 = scmp.ne.s32.totalorder %s151, %s165
      %p167 = scmp.eq.s32.totalorder %s22, 0
      %p168 = por %p166, %p167
      %s170 = sadd.s32 %s169, 1
      %p173 = scmp.eq.s32.totalorder %s16, 1
      %p174 = scmp.ne.s32.totalorder %s169, %s171
      %p175 = scmp.eq.s32.totalorder %s16, 0
      %p176 = por %p174, %p175
      %p177 = scmp.ne.s32.totalorder %s169, %s171
      %p178 = scmp.eq.s32.totalorder %s21, 1
      %p179 = por %p177, %p178
      %p180 = scmp.ne.s32.totalorder %s171, %s172
      %p181 = scmp.eq.s32.totalorder %s21, 0
      %p182 = por %p180, %p181
      %p183 = scmp.ne.s32.totalorder %s171, %s172
      %p184 = scmp.eq.s32.totalorder %s22, 1
      %p185 = por %p183, %p184
      %p187 = scmp.ne.s32.totalorder %s172, %s186
      %p188 = scmp.eq.s32.totalorder %s22, 0
      %p189 = por %p187, %p188
      %s190 = ssub.s32 %s23, %s35
      %s191 = ssub.s32 %s24, %s31
      %s192 = sor.u32 %s190, %s191
      %p193 = scmp.eq.s32.totalorder %s192, 0
      %s195 = sadd.s32 %s194, 1
      %s196 = scalar_select %p193, %s194, %s195
      %p199 = pneg %p193
      %p200 = scmp.eq.s32.totalorder %s16, 1
      %p201 = por %p199, %p200
      %p202 = scmp.ne.s32.totalorder %s194, %s197
      %p203 = scmp.eq.s32.totalorder %s16, 0
      %p204 = por %p202, %p203
      %p205 = scmp.ne.s32.totalorder %s194, %s197
      %p206 = scmp.eq.s32.totalorder %s21, 1
      %p207 = por %p205, %p206
      %p208 = scmp.ne.s32.totalorder %s197, %s198
      %p209 = scmp.eq.s32.totalorder %s21, 0
      %p210 = por %p208, %p209
      %p211 = scmp.ne.s32.totalorder %s197, %s198
      %p212 = scmp.eq.s32.totalorder %s22, 1
      %p213 = por %p211, %p212
      %p215 = scmp.ne.s32.totalorder %s198, %s214
      %p216 = scmp.eq.s32.totalorder %s22, 0
      %p217 = por %p215, %p216
      %p218 = scmp.le.s32.totalorder 1, %s16
      %p219 = scmp.lt.s32.totalorder %s16, 3
      %p220 = pnand %p218, %p219
      %p221 = pneg %p220
      // Predicated region
      $region9: #{tpu_custom_call.1} parent=5 // pred_check
        _
      $region10: #{tpu_custom_call.1} parent=5 // pred_check_branch
        %223 = sbr.rel (%p220) target = $region12
      $region11: #{tpu_custom_call.1} parent=5 // pred_region
        %s224 = ssub.s32 %s16, 1
        // Predicated region
        $region13: #{tpu_custom_call.1} parent=11 // pred_check
          %p225 = pneg %p77
        $region14: #{tpu_custom_call.1} parent=11 // pred_check_branch
          %227 = sbr.rel (%p225) target = $region16
        $region15: #{tpu_custom_call.1} parent=11 // pred_region
          _
        $region16: #{tpu_custom_call.1} parent=11 // pred_fallthru
          _
        // Predicated region
        $region17: #{tpu_custom_call.1} parent=11 // pred_check
          %p228 = pneg %p98
        $region18: #{tpu_custom_call.1} parent=11 // pred_check_branch
          %230 = sbr.rel (%p228) target = $region20
        $region19: #{tpu_custom_call.1} parent=11 // pred_region
          _
        $region20: #{tpu_custom_call.1} parent=11 // pred_fallthru
          _
        // Predicated region
        $region21: #{tpu_custom_call.1} parent=11 // pred_check
          %p231 = pneg %p119
        $region22: #{tpu_custom_call.1} parent=11 // pred_check_branch
          %233 = sbr.rel (%p231) target = $region24
        $region23: #{tpu_custom_call.1} parent=11 // pred_region
          _
        $region24: #{tpu_custom_call.1} parent=11 // pred_fallthru
          _
        // Predicated region
        $region25: #{tpu_custom_call.1} parent=11 // pred_check
          %p234 = pneg %p140
        $region26: #{tpu_custom_call.1} parent=11 // pred_check_branch
          %236 = sbr.rel (%p234) target = $region28
        $region27: #{tpu_custom_call.1} parent=11 // pred_region
          _
        $region28: #{tpu_custom_call.1} parent=11 // pred_fallthru
          _
        // Predicated region
        $region29: #{tpu_custom_call.1} parent=11 // pred_check
          %p237 = pneg %p161
        $region30: #{tpu_custom_call.1} parent=11 // pred_check_branch
          %239 = sbr.rel (%p237) target = $region32
        $region31: #{tpu_custom_call.1} parent=11 // pred_region
          _
        $region32: #{tpu_custom_call.1} parent=11 // pred_fallthru
          _
        // Predicated region
        $region33: #{tpu_custom_call.1} parent=11 // pred_check
          %p240 = pneg %p182
        $region34: #{tpu_custom_call.1} parent=11 // pred_check_branch
          %242 = sbr.rel (%p240) target = $region36
        $region35: #{tpu_custom_call.1} parent=11 // pred_region
          _
        $region36: #{tpu_custom_call.1} parent=11 // pred_fallthru
          _
      $region12: #{tpu_custom_call.1} parent=5 // pred_fallthru
        _
      %p243 = scmp.lt.s32.totalorder %s16, 2
      // Predicated region
      $region37: #{tpu_custom_call.1} parent=5 // pred_check
        %p244 = pneg %p243
      $region38: #{tpu_custom_call.1} parent=5 // pred_check_branch
        %246 = sbr.rel (%p244) target = $region40
      $region39: #{tpu_custom_call.1} parent=5 // pred_region
        // Predicated region
        $region41: #{tpu_custom_call.1} parent=39 // pred_check
          %p247 = pneg %p50
        $region42: #{tpu_custom_call.1} parent=39 // pred_check_branch
          %249 = sbr.rel (%p247) target = $region44
        $region43: #{tpu_custom_call.1} parent=39 // pred_region
          %s250 = smul.u32 2, %s24
          %p251 = scmp.lt.s32.totalorder %s23, 1
          %s252 = scalar_select %p251, %s23, 1
          %p253 = scmp.lt.s32.totalorder %s250, 1
          %s254 = scalar_select %p253, %s250, 1
          %s255 = smul.addr %s252, 2
          %s256 = sadd.s32 %s254, %s255
          %s257 = smul.addr %s256, 4
          %s258 = scalar_lea.vmem %s0, %s257
          %s259 = smul.u32 2, %s24
        $region44: #{tpu_custom_call.1} parent=39 // pred_fallthru
          _
      $region40: #{tpu_custom_call.1} parent=5 // pred_fallthru
        _
      %p260 = scmp.le.s32.totalorder 1, %s16
      %p261 = scmp.lt.s32.totalorder %s16, 3
      %p262 = pnand %p260, %p261
      %p263 = pneg %p262
      // Predicated region
      $region45: #{tpu_custom_call.1} parent=5 // pred_check
        _
      $region46: #{tpu_custom_call.1} parent=5 // pred_check_branch
        %265 = sbr.rel (%p262) target = $region48
      $region47: #{tpu_custom_call.1} parent=5 // pred_region
        %s266 = ssub.s32 %s16, 1
        %s267 = smul.u32 2, %s26
        %p268 = scmp.lt.s32.totalorder %s25, 1
        %s269 = scalar_select %p268, %s25, 1
        %p270 = scmp.lt.s32.totalorder %s267, 1
        %s271 = scalar_select %p270, %s267, 1
        %s272 = smul.addr %s269, 2
        %s273 = sadd.s32 %s271, %s272
        %s274 = smul.addr %s273, 4
        %s275 = scalar_lea.vmem %s0, %s274
        %p276 = pneg %p56
        %p277 = pneg %p53
        %p278 = pneg %p77
        %p279 = pneg %p74
        %p280 = pneg %p98
        %p281 = pneg %p95
        %p282 = pneg %p119
        %p283 = pneg %p116
        %p284 = pneg %p140
        %p285 = pneg %p137
        %p286 = pneg %p161
        %p287 = pneg %p158
        %p288 = pneg %p182
        %p289 = pneg %p179
        %p290 = pneg %p210
        %p291 = pneg %p207
        %s292 = sand.u32 %s197, 1
        %s293 = scalar_lea.sflag [#allocation3], %s292
        %s294 = sand.u32 %s197, 1
        %s295 = smul.addr %s294, 8
        %s296 = scalar_lea.vmem [#allocation2], %s295
        %s297 = smul.u32 2, %s26
        %p298 = scmp.lt.s32.totalorder %s25, 1
        %s299 = scalar_select %p298, %s25, 1
        %p300 = scmp.lt.s32.totalorder %s297, 1
        %s301 = scalar_select %p300, %s297, 1
        %s302 = smul.addr %s299, 2
        %s303 = sadd.s32 %s301, %s302
        %s304 = smul.addr %s303, 4
        %s305 = scalar_lea.vmem %s0, %s304
        %s306 = smul.u32 2, %s26
        %s307 = smul.u32 2, %s26
        %v309 = vld [vmem:[%s1] sm:$0xf]
        %v310 = vld [vmem:[%s1 + $0x4] sm:$0xf]
        %v311 = vld [vmem:[%s1 + $0x8] sm:$0xf]
        %v312 = vld [vmem:[%s1 + $0xc] sm:$0xf]
        %v313 = vld [vmem:[%s3] sm:$0xf]
        %v314 = vld [vmem:[%s3 + $0x4] sm:$0xf]
        %v315 = vld [vmem:[%s3 + $0x8] sm:$0xf]
        %v316 = vld [vmem:[%s3 + $0xc] sm:$0xf]
        %v317 = vld [vmem:[%s5] sm:$0x3]
        %v318 = vld [vmem:[%s2] sm:$0xff]
        %v319 = vld [vmem:[%s2 + $0x8] sm:$0xff]
        %v320 = vld [vmem:[%s2 + $0x10] sm:$0xff]
        %v321 = vld [vmem:[%s2 + $0x18] sm:$0xff]
        %v322 = vld [vmem:[%s4] sm:$0xff]
        %v323 = vld [vmem:[%s4 + $0x8] sm:$0xff]
        %v324 = vld [vmem:[%s4 + $0x10] sm:$0xff]
        %v325 = vld [vmem:[%s4 + $0x18] sm:$0xff]
        %v326 = vld [vmem:[%s6] sm:$0xf]
        %v327 = vld [vmem:[%s305] sm:$0xff]
        %v329 = vcombine.high %v327, %v327
        %v331 = vpack.c.bf16 %v327, %v327
        %v332 = vpack.c.bf16 %v329, %v329
        %334 = vset.pattern.permute.xlu0 0
        %335 = vperm.xlu0 %334, %v318
        %v336 = vpop.permute.xlu0 %335
        %339 = vset.pattern.permute.xlu0 0
        %340 = vperm.xlu0 %339, %v319
        %v341 = vpop.permute.xlu0 %340
        %344 = vset.pattern.permute.xlu0 0
        %345 = vperm.xlu0 %344, %v320
        %v346 = vpop.permute.xlu0 %345
        %349 = vset.pattern.permute.xlu0 0
        %350 = vperm.xlu0 %349, %v321
        %v351 = vpop.permute.xlu0 %350
        %v357 = vunpack.c.l.b16 %v309
        %v358 = vunpack.c.l.b16 %v310
        %v359 = vunpack.c.l.b16 %v311
        %v360 = vunpack.c.l.b16 %v312
        %v361 = vpack.c.b16 %v358, %v357
        %v362 = vpack.c.b16 %v360, %v359
        %vm363 = vcmask 31744
        %v365 = vsel %vm363, %v361, 0
        %v368 = vsel %vm363, %v362, 0
        %vm370 = vcmask 1041408
        %v372 = vsel %vm370, %v331, 0
        %v375 = vsel %vm370, %v332, 0
        %377 = vmatprep.subr.bf16.mxu0 %v375
        %378 = vmatpush1.bf16.msra.mxu0 %v372
        %379 = vmatprep.subr.bf16.mxu0 0
        %380 = vmatpush1.bf16.msra.mxu0 0
        %381 = vmatprep.subr.bf16.mxu0 0
        %382 = vmatpush1.bf16.msra.mxu0 0
        %383 = vmatprep.subr.bf16.mxu0 0
        %384 = vmatpush1.bf16.msra.mxu0 0
        %385 = vmatprep.subr.bf16.mxu0 0
        %386 = vmatpush1.bf16.msra.mxu0 0
        %387 = vmatprep.subr.bf16.mxu0 0
        %388 = vmatpush1.bf16.msra.mxu0 0
        %389 = vmatprep.subr.bf16.mxu0 0
        %390 = vmatpush1.bf16.msra.mxu0 0
        %391 = vmatprep.subr.bf16.mxu0 0
        %392 = vmatpush1.bf16.msra.mxu0 0
        %393 = vmatprep.subr.bf16.mxu0 0
        %394 = vmatpush1.bf16.msra.mxu0 0
        %395 = vmatprep.subr.bf16.mxu0 0
        %396 = vmatpush1.bf16.msra.mxu0 0
        %397 = vmatprep.subr.bf16.mxu0 0
        %398 = vmatpush1.bf16.msra.mxu0 0
        %399 = vmatprep.subr.bf16.mxu0 0
        %400 = vmatpush1.bf16.msra.mxu0 0
        %401 = vmatprep.subr.bf16.mxu0 0
        %402 = vmatpush1.bf16.msra.mxu0 0
        %403 = vmatprep.subr.bf16.mxu0 0
        %404 = vmatpush1.bf16.msra.mxu0 0
        %405 = vmatprep.subr.bf16.mxu0 0
        %406 = vmatpush1.bf16.msra.mxu0 0
        %407 = vmatprep.subr.bf16.mxu0 0
        %408 = vmatpush1.bf16.msra.mxu0 0
        %409 = vmatprep.mubr.bf16.mxu0 0
        %410 = vmatmul.mubr.bf16.gmra.mrb[0].mxu0 %v365
        %v411 = vpop.f32.mrb[0].mxu0
        %v412 = vadd.f32 %v336, %v411
        %v413 = vpop.f32.mrb[0].mxu0
        %v414 = vadd.f32 %v336, %v413
        %v415 = vpop.f32.mrb[0].mxu0
        %v416 = vadd.f32 %v341, %v415
        %v417 = vpop.f32.mrb[0].mxu0
        %v418 = vadd.f32 %v341, %v417
        %419 = vmatprep.mubr.bf16.mxu0 0
        %420 = vmatmul.mubr.bf16.gmra.mrb[0].mxu0 %v368
        %v421 = vpop.f32.mrb[0].mxu0
        %v422 = vadd.f32 %v346, %v421
        %v423 = vpop.f32.mrb[0].mxu0
        %v424 = vadd.f32 %v346, %v423
        %v425 = vpop.f32.mrb[0].mxu0
        %v426 = vadd.f32 %v351, %v425
        %v427 = vpop.f32.mrb[0].mxu0
        %v428 = vadd.f32 %v351, %v427
        %429 = vdwg.mxu0
        %v430 = vmax.f32 %v412, 0.0
        %v431 = vmax.f32 %v414, 0.0
        %v432 = vmax.f32 %v416, 0.0
        %v433 = vmax.f32 %v418, 0.0
        %v434 = vmax.f32 %v422, 0.0
        %v435 = vmax.f32 %v424, 0.0
        %v436 = vmax.f32 %v426, 0.0
        %v437 = vmax.f32 %v428, 0.0
        %v438 = vpack.c.bf16 %v432, %v430
        %v439 = vpack.c.bf16 %v433, %v431
        %v440 = vpack.c.bf16 %v436, %v434
        %v441 = vpack.c.bf16 %v437, %v435
        %443 = vset.pattern.permute.xlu0 0
        %444 = vperm.xlu0 %443, %v322
        %v445 = vpop.permute.xlu0 %444
        %448 = vset.pattern.permute.xlu0 0
        %449 = vperm.xlu0 %448, %v323
        %v450 = vpop.permute.xlu0 %449
        %453 = vset.pattern.permute.xlu0 0
        %454 = vperm.xlu0 %453, %v324
        %v455 = vpop.permute.xlu0 %454
        %458 = vset.pattern.permute.xlu0 0
        %459 = vperm.xlu0 %458, %v325
        %v460 = vpop.permute.xlu0 %459
        %v466 = vunpack.c.l.b16 %v313
        %v467 = vunpack.c.l.b16 %v314
        %v468 = vunpack.c.l.b16 %v315
        %v469 = vunpack.c.l.b16 %v316
        %v470 = vpack.c.b16 %v467, %v466
        %v471 = vpack.c.b16 %v469, %v468
        %vm472 = vcmask 261120
        %v474 = vsel %vm472, %v470, 0
        %v477 = vsel %vm472, %v471, 0
        %479 = vmatprep.subr.bf16.mxu0 %v439
        %480 = vmatpush1.bf16.msra.mxu0 %v438
        %481 = vmatprep.subr.bf16.mxu0 %v441
        %482 = vmatpush1.bf16.msra.mxu0 %v440
        %483 = vmatprep.subr.bf16.mxu0 0
        %484 = vmatpush1.bf16.msra.mxu0 0
        %485 = vmatprep.subr.bf16.mxu0 0
        %486 = vmatpush1.bf16.msra.mxu0 0
        %487 = vmatprep.subr.bf16.mxu0 0
        %488 = vmatpush1.bf16.msra.mxu0 0
        %489 = vmatprep.subr.bf16.mxu0 0
        %490 = vmatpush1.bf16.msra.mxu0 0
        %491 = vmatprep.subr.bf16.mxu0 0
        %492 = vmatpush1.bf16.msra.mxu0 0
        %493 = vmatprep.subr.bf16.mxu0 0
        %494 = vmatpush1.bf16.msra.mxu0 0
        %495 = vmatprep.subr.bf16.mxu0 0
        %496 = vmatpush1.bf16.msra.mxu0 0
        %497 = vmatprep.subr.bf16.mxu0 0
        %498 = vmatpush1.bf16.msra.mxu0 0
        %499 = vmatprep.subr.bf16.mxu0 0
        %500 = vmatpush1.bf16.msra.mxu0 0
        %501 = vmatprep.subr.bf16.mxu0 0
        %502 = vmatpush1.bf16.msra.mxu0 0
        %503 = vmatprep.subr.bf16.mxu0 0
        %504 = vmatpush1.bf16.msra.mxu0 0
        %505 = vmatprep.subr.bf16.mxu0 0
        %506 = vmatpush1.bf16.msra.mxu0 0
        %507 = vmatprep.subr.bf16.mxu0 0
        %508 = vmatpush1.bf16.msra.mxu0 0
        %509 = vmatprep.subr.bf16.mxu0 0
        %510 = vmatpush1.bf16.msra.mxu0 0
        %511 = vmatprep.mubr.bf16.mxu0 0
        %512 = vmatmul.mubr.bf16.gmra.mrb[0].mxu0 %v474
        %v513 = vpop.f32.mrb[0].mxu0
        %v514 = vadd.f32 %v445, %v513
        %v515 = vpop.f32.mrb[0].mxu0
        %v516 = vadd.f32 %v445, %v515
        %v517 = vpop.f32.mrb[0].mxu0
        %v518 = vadd.f32 %v450, %v517
        %v519 = vpop.f32.mrb[0].mxu0
        %v520 = vadd.f32 %v450, %v519
        %521 = vmatprep.mubr.bf16.mxu0 0
        %522 = vmatmul.mubr.bf16.gmra.mrb[0].mxu0 %v477
        %v523 = vpop.f32.mrb[0].mxu0
        %v524 = vadd.f32 %v455, %v523
        %v525 = vpop.f32.mrb[0].mxu0
        %v526 = vadd.f32 %v455, %v525
        %v527 = vpop.f32.mrb[0].mxu0
        %v528 = vadd.f32 %v460, %v527
        %v529 = vpop.f32.mrb[0].mxu0
        %v530 = vadd.f32 %v460, %v529
        %531 = vdwg.mxu0
        %v532 = vmax.f32 %v514, 0.0
        %v533 = vmax.f32 %v516, 0.0
        %v534 = vmax.f32 %v518, 0.0
        %v535 = vmax.f32 %v520, 0.0
        %v536 = vmax.f32 %v524, 0.0
        %v537 = vmax.f32 %v526, 0.0
        %v538 = vmax.f32 %v528, 0.0
        %v539 = vmax.f32 %v530, 0.0
        %v540 = vpack.c.bf16 %v534, %v532
        %v541 = vpack.c.bf16 %v535, %v533
        %v542 = vpack.c.bf16 %v538, %v536
        %v543 = vpack.c.bf16 %v539, %v537
        %545 = vset.pattern.permute.xlu0 0
        %546 = vperm.xlu0 %545, %v326
        %v547 = vpop.permute.xlu0 %546
        %v550 = vsel %vm472, %v317, 0
        %552 = vmatprep.subr.bf16.mxu0 %v541
        %553 = vmatpush1.bf16.msra.mxu0 %v540
        %554 = vmatprep.subr.bf16.mxu0 %v543
        %555 = vmatpush1.bf16.msra.mxu0 %v542
        %556 = vmatprep.subr.bf16.mxu0 0
        %557 = vmatpush1.bf16.msra.mxu0 0
        %558 = vmatprep.subr.bf16.mxu0 0
        %559 = vmatpush1.bf16.msra.mxu0 0
        %560 = vmatprep.subr.bf16.mxu0 0
        %561 = vmatpush1.bf16.msra.mxu0 0
        %562 = vmatprep.subr.bf16.mxu0 0
        %563 = vmatpush1.bf16.msra.mxu0 0
        %564 = vmatprep.subr.bf16.mxu0 0
        %565 = vmatpush1.bf16.msra.mxu0 0
        %566 = vmatprep.subr.bf16.mxu0 0
        %567 = vmatpush1.bf16.msra.mxu0 0
        %568 = vmatprep.subr.bf16.mxu0 0
        %569 = vmatpush1.bf16.msra.mxu0 0
        %570 = vmatprep.subr.bf16.mxu0 0
        %571 = vmatpush1.bf16.msra.mxu0 0
        %572 = vmatprep.subr.bf16.mxu0 0
        %573 = vmatpush1.bf16.msra.mxu0 0
        %574 = vmatprep.subr.bf16.mxu0 0
        %575 = vmatpush1.bf16.msra.mxu0 0
        %576 = vmatprep.subr.bf16.mxu0 0
        %577 = vmatpush1.bf16.msra.mxu0 0
        %578 = vmatprep.subr.bf16.mxu0 0
        %579 = vmatpush1.bf16.msra.mxu0 0
        %580 = vmatprep.subr.bf16.mxu0 0
        %581 = vmatpush1.bf16.msra.mxu0 0
        %582 = vmatprep.subr.bf16.mxu0 0
        %583 = vmatpush1.bf16.msra.mxu0 0
        %584 = vmatprep.mubr.bf16.mxu0 0
        %585 = vmatmul.mubr.bf16.gmra.mrb[0].mxu0 %v550
        %v586 = vpop.f32.mrb[0].mxu0
        %v587 = vadd.f32 %v547, %v586
        %v588 = vpop.f32.mrb[0].mxu0
        %v589 = vadd.f32 %v547, %v588
        %v590 = vpop.f32.mrb[0].mxu0
        %v591 = vpop.f32.mrb[0].mxu0
        %592 = vdwg.mxu0
        %v595 = vcombine.low %v587, %v589
        %597 = vst [vmem:[%s296] sm:$0xff] %v595
        %s598 = sand.u32 %s197, 1
        %s599 = scalar_lea.sflag [#allocation3], %s598
        %s600 = sand.u32 %s197, 1
        %s601 = smul.addr %s600, 8
        %s602 = scalar_lea.vmem [#allocation2], %s601
        // Predicated region
        $region49: #{tpu_custom_call.1} parent=47 // pred_check
          %p603 = pneg %p207
        $region50: #{tpu_custom_call.1} parent=47 // pred_check_branch
          %605 = sbr.rel (%p603) target = $region52
        $region51: #{tpu_custom_call.1} parent=47 // pred_region
          %s606 = smul.u32 2, %s26
          %s608 = ssub.s32 128, 128
          %609 = vsyncadd %s599, %s608
          %s610 = smul.addr %s25, 2
          %s611 = sadd.s32 %s606, %s610
          %s612 = smul.addr %s611, 64
          %s613 = scalar_lea.hbm %s7, %s612
          %s615 = sshll.u32 %s602, 4
          %s616 = int_to_ptr.vmem [resolvable:$true] %s615
          %618 = dma.vmem_to_hbm [thread:$0]  %s616, 128, %s613, %s599
        $region52: #{tpu_custom_call.1} parent=47 // pred_fallthru
          _
      $region48: #{tpu_custom_call.1} parent=5 // pred_fallthru
        _
      %p619 = scmp.le.s32.totalorder 2, %s16
      // Predicated region
      $region53: #{tpu_custom_call.1} parent=5 // pred_check
        %p620 = pneg %p619
      $region54: #{tpu_custom_call.1} parent=5 // pred_check_branch
        %622 = sbr.rel (%p620) target = $region56
      $region55: #{tpu_custom_call.1} parent=5 // pred_region
        %s623 = ssub.s32 %s16, 2
        // Predicated region
        $region57: #{tpu_custom_call.1} parent=55 // pred_check
          %p624 = pneg %p213
        $region58: #{tpu_custom_call.1} parent=55 // pred_check_branch
          %626 = sbr.rel (%p624) target = $region60
        $region59: #{tpu_custom_call.1} parent=55 // pred_region
          %s627 = sand.u32 %s198, 1
          %s628 = scalar_lea.sflag [#allocation3], %s627
          %s629 = sand.u32 %s198, 1
          %s630 = smul.addr %s629, 8
          %s631 = scalar_lea.vmem [#allocation2], %s630
          %632 = dma.done %s628, 128
        $region60: #{tpu_custom_call.1} parent=55 // pred_fallthru
          _
      $region56: #{tpu_custom_call.1} parent=5 // pred_fallthru
        _
    $region6: #{tpu_custom_call.1} parent=1 // loop_footer
      %s20 = sadd.s32 1, %s16
    $region7: #{tpu_custom_call.1} parent=1 // loop_footer_branch
      %15 = sbr.rel target = $region3
    $region8: #{tpu_custom_call.1} parent=1 // loop_exit
      _
    %633 = vsyncpa [#allocation3], 1
    %s634 = scalar_lea.sflag [#allocation3], 1
    %635 = vsyncpa %s634, 1

</llo_original>
